<compile_context>
chip_gen: v6e
topology: v6e:2x2x1
jax: 0.10.0
libtpu: 0.0.40
codegen_flags: <defaults>
</compile_context>

<pallas_src>
import jax
import jax.numpy as jnp
from jax.experimental import pallas as pl
from jax.experimental.pallas import tpu as pltpu

LANES = 128                 # one MXU / vreg lane tile; every fused layer fits it
_WDTYPE = jnp.bfloat16      # weight storage dtype (MXU-native); biases stay f32


# ----------------------------------------------------------------------------
# helpers
# ----------------------------------------------------------------------------
def _leaky_relu(x, slope=0.2):
    return jnp.where(x > 0, x, slope * x)


def _mxu_dot(x, w):
    # bf16 x bf16 -> f32 accumulate (shared by kernel and pure-JAX reference
    # so the correctness check mirrors the kernel math exactly).
    return jnp.dot(x.astype(w.dtype), w, preferred_element_type=jnp.float32)


# ----------------------------------------------------------------------------
# fused kernel: 4 sequential 128x128 matmuls over one (B,128) activation slab
# ----------------------------------------------------------------------------
def _make_gan_kernel(n_layers, mixed_layer, disc_lane, gen_out_width, residual):
    # static per-layer plan (baked at trace time):
    #   layers 0 .. mixed_layer-1 : LeakyReLU on all lanes
    #   layer  mixed_layer        : LeakyReLU on gen lanes, sigmoid at disc_lane
    #   layer  n_layers-1         : no activation (generator out_fc)
    def kernel(x_ref, w_ref, b_ref, out_ref):
        x = x_ref[...]                                   # (B, 128) f32
        lane = jax.lax.broadcasted_iota(jnp.int32, x.shape, 1)
        b_all = b_ref[...]                               # (n_layers, 128) f32

        h = x
        disc_prob = None
        for i in range(n_layers):                        # tiny fixed depth: unrolled
            w = w_ref[i]                                 # (128,128) bf16, free view
            z = jnp.dot(h.astype(w.dtype), w,
                        preferred_element_type=jnp.float32) + b_all[i:i + 1, :]
            if i == n_layers - 1:                        # generator out_fc
                h = z
            elif i == mixed_layer:                       # gen LReLU + disc sigmoid
                h = jnp.where(lane == disc_lane, jax.nn.sigmoid(z), _leaky_relu(z))
                disc_prob = h                            # sigmoid kept in f32
            else:
                h = _leaky_relu(z)                       # zero-padded lanes stay 0

        y = h
        if residual:
            # codedict_out = generator(lmk_delta, gan_input) + gan_input;
            # gan_input lives in lanes [0, gen_out_width) of the input slab.
            y = y + jnp.where(lane < gen_out_width, x, 0.0)
        # carry the (already-final) discriminator probability into the slab
        y = y + jnp.where(lane == disc_lane, disc_prob, 0.0)
        out_ref[...] = y.astype(out_ref.dtype)

    return kernel


def build_gan1d_forward(meta, residual=True):
    d_off = int(meta["disc_off"])
    gen_out_width = int(meta["gen_out_width"])

    def fwd(w_stack, b_stack, lmk, shp, feats):
        bsz = lmk.shape[0]
        shp_len, lmk_len, feat_dim = shp.shape[1], lmk.shape[1], feats.shape[1]
        n_layers = w_stack.shape[0]

        # single lane-dense input slab: [shp | lmk | pad | feats | pad]
        x = jnp.zeros((bsz, LANES), jnp.float32)
        x = x.at[:, :shp_len].set(shp)
        x = x.at[:, shp_len:shp_len + lmk_len].set(lmk)
        x = x.at[:, d_off:d_off + feat_dim].set(feats)

        cost = pl.CostEstimate(
            flops=int(2 * bsz * LANES * LANES * n_layers),
            transcendentals=int(bsz * LANES),            # sigmoid exp over the tile
            bytes_accessed=int(x.nbytes + w_stack.nbytes + b_stack.nbytes
                               + bsz * LANES * 4))

        out = pl.pallas_call(
            _make_gan_kernel(n_layers, n_layers - 2, d_off, gen_out_width, residual),
            out_shape=jax.ShapeDtypeStruct((bsz, LANES), jnp.float32),
            grid=(1,),
            in_specs=[
                pl.BlockSpec((bsz, LANES), lambda i: (0, 0)),
                pl.BlockSpec(w_stack.shape, lambda i: (0, 0, 0)),
                pl.BlockSpec(b_stack.shape, lambda i: (0, 0)),
            ],
            out_specs=pl.BlockSpec((bsz, LANES), lambda i: (0, 0)),
            compiler_params=pltpu.CompilerParams(dimension_semantics=("arbitrary",)),
            cost_estimate=cost,
        )(x, w_stack, b_stack)

        codedict_out = out[:, :gen_out_width]
        disc_prob = out[:, d_off:d_off + 1]
        return codedict_out, disc_prob

    return jax.jit(fwd)


# ----------------------------------------------------------------------------
# parameter init: raw (PyTorch-structured) params + packed block-diagonal stacks
# ----------------------------------------------------------------------------
def _lin_init(key, din, dout, bias=True):
    kw, kb = jax.random.split(key)
    w = jax.random.normal(kw, (din, dout), jnp.float32) / jnp.sqrt(float(din))
    b = (0.01 * jax.random.normal(kb, (1, dout), jnp.float32)) if bias else None
    return w, b


def init_gan1d_params(key, lmk_len, shp_len, hidden, disc_channels):
    out_channel = shp_len
    n_gen_fc = len(hidden) - 1
    n_disc_mlp = len(disc_channels) - 1
    # depth alignment required by the fused kernel (true for this config);
    # TODO(synk): mismatched depths would need identity-passthrough layers.
    assert n_disc_mlp == len(hidden) - 1 and len(hidden) >= 2

    half = hidden[0] // 2
    keys = jax.random.split(key, 4 + n_gen_fc + n_disc_mlp)
    ki = iter(range(len(keys)))

    w_lmk, b_lmk = _lin_init(keys[next(ki)], lmk_len, half)
    w_shp, b_shp = _lin_init(keys[next(ki)], shp_len, half)
    gen_fc = [_lin_init(keys[next(ki)], hidden[i - 1], hidden[i])
              for i in range(1, len(hidden))]
    w_out, b_out = _lin_init(keys[next(ki)], hidden[-1], out_channel)
    disc_mlp = [_lin_init(keys[next(ki)], disc_channels[i - 1], disc_channels[i],
                          bias=False)[0]                       # nn.Linear(bias=False)
                for i in range(1, len(disc_channels))]
    w_dfc, b_dfc = _lin_init(keys[next(ki)], disc_channels[-1], 1)

    # lane offsets: gen occupies [0, d_off), disc occupies [d_off, 128)
    gen_widths = [lmk_len + shp_len] + list(hidden) + [out_channel]
    disc_widths = list(disc_channels) + [1]
    d_off = max(gen_widths)
    assert d_off + max(disc_widths) <= LANES, "fused gen+disc layer must fit 128 lanes"

    n_layers = len(hidden) + 1
    w_stack = jnp.zeros((n_layers, LANES, LANES), jnp.float32)
    b_stack = jnp.zeros((n_layers, LANES), jnp.float32)

    # layer 0: gen front-end (lmk_fc / shp_fc + torch.cat) fused with disc mlp[0]
    #   in lanes : shp 0:shp_len, lmk shp_len:+lmk_len, feats d_off:+ch0
    #   out lanes: [lmk_h 0:half | shp_h half:hidden0], disc d_off:+ch1
    w_stack = w_stack.at[0, shp_len:shp_len + lmk_len, 0:half].set(w_lmk)
    w_stack = w_stack.at[0, 0:shp_len, half:hidden[0]].set(w_shp)
    w_stack = w_stack.at[0, d_off:d_off + disc_channels[0],
                         d_off:d_off + disc_channels[1]].set(disc_mlp[0])
    b_stack = b_stack.at[0, 0:half].set(b_lmk[0])
    b_stack = b_stack.at[0, half:hidden[0]].set(b_shp[0])

    # middle layers: gen fc[k-1] fused with disc mlp[k]
    for k in range(1, len(hidden) - 1):
        wg, bg = gen_fc[k - 1]
        w_stack = w_stack.at[k, 0:hidden[k - 1], 0:hidden[k]].set(wg)
        b_stack = b_stack.at[k, 0:hidden[k]].set(bg[0])
        w_stack = w_stack.at[k, d_off:d_off + disc_channels[k],
                             d_off:d_off + disc_channels[k + 1]].set(disc_mlp[k])

    # mixed layer: last gen fc (LeakyReLU) fused with disc fc (sigmoid @ d_off)
    m = len(hidden) - 1
    wg, bg = gen_fc[-1]
    w_stack = w_stack.at[m, 0:hidden[-2], 0:hidden[-1]].set(wg)
    b_stack = b_stack.at[m, 0:hidden[-1]].set(bg[0])
    w_stack = w_stack.at[m, d_off:d_off + disc_channels[-1], d_off:d_off + 1].set(w_dfc)
    b_stack = b_stack.at[m, d_off].set(b_dfc[0, 0])

    # final layer: generator out_fc (no activation)
    w_stack = w_stack.at[n_layers - 1, 0:hidden[-1], 0:out_channel].set(w_out)
    b_stack = b_stack.at[n_layers - 1, 0:out_channel].set(b_out[0])

    raw = {  # structural (PyTorch-shaped) params for the pure-JAX reference
        "w_lmk": w_lmk.astype(_WDTYPE), "b_lmk": b_lmk,
        "w_shp": w_shp.astype(_WDTYPE), "b_shp": b_shp,
        "gen_fc": [(w.astype(_WDTYPE), b) for w, b in gen_fc],
        "w_out": w_out.astype(_WDTYPE), "b_out": b_out,
        "disc_mlp": [w.astype(_WDTYPE) for w in disc_mlp],
        "w_dfc": w_dfc.astype(_WDTYPE), "b_dfc": b_dfc,
    }
    meta = {"disc_off": d_off, "gen_out_width": out_channel}
    return raw, w_stack.astype(_WDTYPE), b_stack, meta


# ----------------------------------------------------------------------------
# pure-JAX references (structural form of the PyTorch module, same bf16 weights)
# ----------------------------------------------------------------------------
def ref_generator(p, lmk, shp, residual=True):
    lmk_h = _leaky_relu(_mxu_dot(lmk, p["w_lmk"]) + p["b_lmk"])
    shp_h = _leaky_relu(_mxu_dot(shp, p["w_shp"]) + p["b_shp"])
    x = jnp.concatenate([lmk_h, shp_h], axis=1)          # torch.cat([lmk, shp], dim=1)
    for w, b in p["gen_fc"]:
        x = _leaky_relu(_mxu_dot(x, w) + b)
    y = _mxu_dot(x, p["w_out"]) + p["b_out"]
    return y + shp if residual else y


def ref_discriminator(p, x):
    for w in p["disc_mlp"]:
        x = _leaky_relu(_mxu_dot(x, w))
    return jax.nn.sigmoid(_mxu_dot(x, p["w_dfc"]) + p["b_dfc"])


# ----------------------------------------------------------------------------
if __name__ == "__main__":
    key = jax.random.PRNGKey(0)
    k_par, k_lmk, k_shp, k_feat = jax.random.split(key, 4)

    B = 8                    # batch
    LMK_LEN = 24             # flattened landmark-delta length (8 landmarks * 3)
    SHP_LEN = 32             # demo stand-in for concat([shape, exp, pose])
    HIDDEN = [64, 64, 32]    # Generator1D hidden_channel
    DISC_CH = [48, 64, 32]   # Discriminator channels (48 = VGG feature dim)

    raw, w_stack, b_stack, meta = init_gan1d_params(k_par, LMK_LEN, SHP_LEN,
                                                    HIDDEN, DISC_CH)

    lmk_delta = jax.random.normal(k_lmk, (B, LMK_LEN), jnp.float32)
    gan_input = jax.random.normal(k_shp, (B, SHP_LEN), jnp.float32)
    feats = jax.random.normal(k_feat, (B, DISC_CH[0]), jnp.float32)

    fwd = build_gan1d_forward(meta, residual=True)

    # codedict_out = generator(lmk_delta, gan_input) + gan_input   (GAN1D.forward)
    codedict_out, disc_out = fwd(w_stack, b_stack, lmk_delta, gan_input, feats)
    jax.block_until_ready((codedict_out, disc_out))

    ref_code = ref_generator(raw, lmk_delta, gan_input, residual=True)
    ref_d = ref_discriminator(raw, feats)

    assert codedict_out.shape == (B, SHP_LEN) and disc_out.shape == (B, 1)
    assert jnp.allclose(codedict_out, ref_code, atol=1e-3, rtol=1e-3), \
        float(jnp.max(jnp.abs(codedict_out - ref_code)))
    assert jnp.allclose(disc_out, ref_d, atol=1e-3, rtol=1e-3), \
        float(jnp.max(jnp.abs(disc_out - ref_d)))

    print("KERNEL_OK")
</pallas_src>

<mosaic_0001>
module attributes {stable_mosaic.version = 11 : i64} {
  func.func @kernel(%arg0: i32, %arg1: memref<8x128xf32, #tpu.memory_space<vmem>>, %arg2: memref<4x128x128xbf16, #tpu.memory_space<vmem>>, %arg3: memref<4x128xf32, #tpu.memory_space<vmem>>, %arg4: memref<8x128xf32, #tpu.memory_space<vmem>>) attributes {dimension_semantics = [#tpu.dimension_semantics<arbitrary>], iteration_bounds = array<i64: 1>, scalar_prefetch = 0 : i64, scratch_operands = 0 : i64, tpu.core_type = #tpu.core_type<tc>, window_params = [{pipeline_mode = #tpu.pipeline_mode<synchronous>, transform_indices = @transform_0, window_bounds = array<i64: 8, 128>}, {pipeline_mode = #tpu.pipeline_mode<synchronous>, transform_indices = @transform_1, window_bounds = array<i64: 4, 128, 128>}, {pipeline_mode = #tpu.pipeline_mode<synchronous>, transform_indices = @transform_2, window_bounds = array<i64: 4, 128>}, {pipeline_mode = #tpu.pipeline_mode<synchronous>, transform_indices = @transform_3, window_bounds = array<i64: 8, 128>}]} {
    %c0 = arith.constant 0 : index
    %c0_0 = arith.constant 0 : index
    %0 = vector.load %arg1[%c0, %c0_0] : memref<8x128xf32, #tpu.memory_space<vmem>>, vector<8x128xf32>
    %1 = tpu.iota {dimensions = array<i32: 1>} : vector<8x128xi32>
    %c0_1 = arith.constant 0 : index
    %c0_2 = arith.constant 0 : index
    %2 = vector.load %arg3[%c0_1, %c0_2] : memref<4x128xf32, #tpu.memory_space<vmem>>, vector<4x128xf32>
    %c0_3 = arith.constant 0 : index
    %c0_4 = arith.constant 0 : index
    %c0_5 = arith.constant 0 : index
    %3 = vector.load %arg2[%c0_3, %c0_4, %c0_5] : memref<4x128x128xbf16, #tpu.memory_space<vmem>>, vector<1x128x128xbf16>
    %4 = vector.shape_cast %3 : vector<1x128x128xbf16> to vector<128x128xbf16>
    %5 = arith.truncf %0 : vector<8x128xf32> to vector<8x128xbf16>
    %cst = arith.constant dense<0.000000e+00> : vector<8x128xf32>
    %6 = tpu.matmul %5, %4, %cst {dimension_numbers = #tpu.dot_dimension_numbers<[1], [0], [0], [1], [0, 0, 1, 1], [], []>} : vector<8x128xbf16>, vector<128x128xbf16>, vector<8x128xf32> -> vector<8x128xf32>
    %7 = vector.extract_strided_slice %2 {offsets = [0, 0], sizes = [1, 128], strides = [1, 1]} : vector<4x128xf32> to vector<1x128xf32>
    %8 = vector.broadcast %7 : vector<1x128xf32> to vector<8x128xf32>
    %9 = arith.addf %6, %8 : vector<8x128xf32>
    %cst_6 = arith.constant 0.000000e+00 : f32
    %10 = vector.broadcast %cst_6 : f32 to vector<8x128xf32>
    %11 = arith.cmpf ogt, %9, %10 : vector<8x128xf32>
    %cst_7 = arith.constant 2.000000e-01 : f32
    %12 = vector.broadcast %cst_7 : f32 to vector<8x128xf32>
    %13 = arith.mulf %12, %9 : vector<8x128xf32>
    %14 = arith.select %11, %9, %13 : vector<8x128xi1>, vector<8x128xf32>
    %c1 = arith.constant 1 : index
    %c0_8 = arith.constant 0 : index
    %c0_9 = arith.constant 0 : index
    %15 = vector.load %arg2[%c1, %c0_8, %c0_9] : memref<4x128x128xbf16, #tpu.memory_space<vmem>>, vector<1x128x128xbf16>
    %16 = vector.shape_cast %15 : vector<1x128x128xbf16> to vector<128x128xbf16>
    %17 = arith.truncf %14 : vector<8x128xf32> to vector<8x128xbf16>
    %cst_10 = arith.constant dense<0.000000e+00> : vector<8x128xf32>
    %18 = tpu.matmul %17, %16, %cst_10 {dimension_numbers = #tpu.dot_dimension_numbers<[1], [0], [0], [1], [0, 0, 1, 1], [], []>} : vector<8x128xbf16>, vector<128x128xbf16>, vector<8x128xf32> -> vector<8x128xf32>
    %19 = vector.extract_strided_slice %2 {offsets = [1, 0], sizes = [1, 128], strides = [1, 1]} : vector<4x128xf32> to vector<1x128xf32>
    %20 = vector.broadcast %19 : vector<1x128xf32> to vector<8x128xf32>
    %21 = arith.addf %18, %20 : vector<8x128xf32>
    %cst_11 = arith.constant 0.000000e+00 : f32
    %22 = vector.broadcast %cst_11 : f32 to vector<8x128xf32>
    %23 = arith.cmpf ogt, %21, %22 : vector<8x128xf32>
    %cst_12 = arith.constant 2.000000e-01 : f32
    %24 = vector.broadcast %cst_12 : f32 to vector<8x128xf32>
    %25 = arith.mulf %24, %21 : vector<8x128xf32>
    %26 = arith.select %23, %21, %25 : vector<8x128xi1>, vector<8x128xf32>
    %c2 = arith.constant 2 : index
    %c0_13 = arith.constant 0 : index
    %c0_14 = arith.constant 0 : index
    %27 = vector.load %arg2[%c2, %c0_13, %c0_14] : memref<4x128x128xbf16, #tpu.memory_space<vmem>>, vector<1x128x128xbf16>
    %28 = vector.shape_cast %27 : vector<1x128x128xbf16> to vector<128x128xbf16>
    %29 = arith.truncf %26 : vector<8x128xf32> to vector<8x128xbf16>
    %cst_15 = arith.constant dense<0.000000e+00> : vector<8x128xf32>
    %30 = tpu.matmul %29, %28, %cst_15 {dimension_numbers = #tpu.dot_dimension_numbers<[1], [0], [0], [1], [0, 0, 1, 1], [], []>} : vector<8x128xbf16>, vector<128x128xbf16>, vector<8x128xf32> -> vector<8x128xf32>
    %31 = vector.extract_strided_slice %2 {offsets = [2, 0], sizes = [1, 128], strides = [1, 1]} : vector<4x128xf32> to vector<1x128xf32>
    %32 = vector.broadcast %31 : vector<1x128xf32> to vector<8x128xf32>
    %33 = arith.addf %30, %32 : vector<8x128xf32>
    %c64_i32 = arith.constant 64 : i32
    %34 = vector.broadcast %c64_i32 : i32 to vector<8x128xi32>
    %35 = arith.cmpi eq, %1, %34 : vector<8x128xi32>
    %36 = arith.negf %33 : vector<8x128xf32>
    %37 = math.exp %36 : vector<8x128xf32>
    %cst_16 = arith.constant 1.000000e+00 : f32
    %38 = vector.broadcast %cst_16 : f32 to vector<8x128xf32>
    %39 = arith.addf %38, %37 : vector<8x128xf32>
    %40 = arith.divf %38, %39 : vector<8x128xf32>
    %cst_17 = arith.constant 0.000000e+00 : f32
    %41 = vector.broadcast %cst_17 : f32 to vector<8x128xf32>
    %42 = arith.cmpf ogt, %33, %41 : vector<8x128xf32>
    %cst_18 = arith.constant 2.000000e-01 : f32
    %43 = vector.broadcast %cst_18 : f32 to vector<8x128xf32>
    %44 = arith.mulf %43, %33 : vector<8x128xf32>
    %45 = arith.select %42, %33, %44 : vector<8x128xi1>, vector<8x128xf32>
    %46 = arith.select %35, %40, %45 : vector<8x128xi1>, vector<8x128xf32>
    %c3 = arith.constant 3 : index
    %c0_19 = arith.constant 0 : index
    %c0_20 = arith.constant 0 : index
    %47 = vector.load %arg2[%c3, %c0_19, %c0_20] : memref<4x128x128xbf16, #tpu.memory_space<vmem>>, vector<1x128x128xbf16>
    %48 = vector.shape_cast %47 : vector<1x128x128xbf16> to vector<128x128xbf16>
    %49 = arith.truncf %46 : vector<8x128xf32> to vector<8x128xbf16>
    %cst_21 = arith.constant dense<0.000000e+00> : vector<8x128xf32>
    %50 = tpu.matmul %49, %48, %cst_21 {dimension_numbers = #tpu.dot_dimension_numbers<[1], [0], [0], [1], [0, 0, 1, 1], [], []>} : vector<8x128xbf16>, vector<128x128xbf16>, vector<8x128xf32> -> vector<8x128xf32>
    %51 = vector.extract_strided_slice %2 {offsets = [3, 0], sizes = [1, 128], strides = [1, 1]} : vector<4x128xf32> to vector<1x128xf32>
    %52 = vector.broadcast %51 : vector<1x128xf32> to vector<8x128xf32>
    %53 = arith.addf %50, %52 : vector<8x128xf32>
    %c32_i32 = arith.constant 32 : i32
    %54 = vector.broadcast %c32_i32 : i32 to vector<8x128xi32>
    %55 = arith.cmpi slt, %1, %54 : vector<8x128xi32>
    %cst_22 = arith.constant 0.000000e+00 : f32
    %56 = vector.broadcast %cst_22 : f32 to vector<8x128xf32>
    %57 = arith.select %55, %0, %56 : vector<8x128xi1>, vector<8x128xf32>
    %58 = arith.addf %53, %57 : vector<8x128xf32>
    %c64_i32_23 = arith.constant 64 : i32
    %59 = vector.broadcast %c64_i32_23 : i32 to vector<8x128xi32>
    %60 = arith.cmpi eq, %1, %59 : vector<8x128xi32>
    %cst_24 = arith.constant 0.000000e+00 : f32
    %61 = vector.broadcast %cst_24 : f32 to vector<8x128xf32>
    %62 = arith.select %60, %46, %61 : vector<8x128xi1>, vector<8x128xf32>
    %63 = arith.addf %58, %62 : vector<8x128xf32>
    %c0_25 = arith.constant 0 : index
    %c0_26 = arith.constant 0 : index
    %64 = vector.load %arg4[%c0_25, %c0_26] : memref<8x128xf32, #tpu.memory_space<vmem>>, vector<8x128xf32>
    tpu.vector_store %arg4[%c0_25, %c0_26], %63 {strides = array<i32>} : memref<8x128xf32, #tpu.memory_space<vmem>>, vector<8x128xf32>,
    return
  }
  func.func @transform_0(%arg0: i32) -> (i32, i32) {
    %c0_i32 = arith.constant 0 : i32
    %c0_i32_0 = arith.constant 0 : i32
    %c0_i32_1 = arith.constant 0 : i32
    return %c0_i32, %c0_i32_0 : i32, i32
  }
  func.func @transform_1(%arg0: i32) -> (i32, i32, i32) {
    %c0_i32 = arith.constant 0 : i32
    %c0_i32_0 = arith.constant 0 : i32
    %c0_i32_1 = arith.constant 0 : i32
    %c0_i32_2 = arith.constant 0 : i32
    return %c0_i32, %c0_i32_0, %c0_i32_1 : i32, i32, i32
  }
  func.func @transform_2(%arg0: i32) -> (i32, i32) {
    %c0_i32 = arith.constant 0 : i32
    %c0_i32_0 = arith.constant 0 : i32
    %c0_i32_1 = arith.constant 0 : i32
    return %c0_i32, %c0_i32_0 : i32, i32
  }
  func.func @transform_3(%arg0: i32) -> (i32, i32) {
    %c0_i32 = arith.constant 0 : i32
    %c0_i32_0 = arith.constant 0 : i32
    %c0_i32_1 = arith.constant 0 : i32
    return %c0_i32, %c0_i32_0 : i32, i32
  }
}

</mosaic_0001>

<llo_original>
// kernel: fwd.1
$region0: #{fwd.1}
  #allocation0 [shape = 'u32[]', space=smem, size = 0x4, offset = 0x4, fixed_abs, tag = 'smem constant byte address 0x4 - core index']
  #allocation1 [shape = 'u32[144,128]{1,0:T(1,128)}', space=vmem, size = 0x12000, scoped, tag = 'internal scratch']
  %s0 = inlined_call_operand.vmem [shape: f32[8,128], index: 0, kind: input, shape index: {}]
  %s1 = inlined_call_operand.hbm [shape: bf16[4,128,128], index: 1, kind: input, shape index: {}]
  %s2 = inlined_call_operand.vmem [shape: f32[4,128], index: 2, kind: input, shape index: {}]
  %s3 = inlined_call_operand.vmem [shape: f32[8,128], index: 3, kind: output, shape index: {}]
  %s4 = sld [smem:[#allocation0]]
  $region26: #{fwd.1} parent=0
    _
  %s6 = ssub.s32 1, %s4
  %s7 = scalar_select 0, %s6, %s4
  $region1: #{fwd.1} parent=0
    #allocation2 [shape = 'u8[131072]{0}', space=vmem, size = 0x20000, scoped, tag = 'input window, operand 1, single buffered']
    #allocation3 [shape = 's32[1]{0}', space=sflag, size = 0x4, scoped, tag = 'scoped memory for fwd.1']
    %8 = vsyncpa [#allocation3], 0
    // Predicated region
    $region2: #{fwd.1} parent=1 // pred_check
      _
    $region3: #{fwd.1} parent=1 // pred_check_branch
      %10 = sbr.rel (0) target = $region5
    $region4: #{fwd.1} parent=1 // pred_region
      _
    $region5: #{fwd.1} parent=1 // pred_fallthru
      _
    // Predicated region
    $region6: #{fwd.1} parent=1 // pred_check
      _
    $region7: #{fwd.1} parent=1 // pred_check_branch
      %12 = sbr.rel (0) target = $region9
    $region8: #{fwd.1} parent=1 // pred_region
      %s14 = ssub.s32 4096, 4096
      %15 = vsyncadd [#allocation3], %s14
      %s16 = sshll.u32 [#allocation2], 4
      %s17 = int_to_ptr.vmem [resolvable:$true] %s16
      %22 = dma.hbm_to_vmem [thread:$0]  %s1, 4096, %s17, [#allocation3], 64, 64, 4
    $region9: #{fwd.1} parent=1 // pred_fallthru
      _
    // Predicated region
    $region10: #{fwd.1} parent=1 // pred_check
      _
    $region11: #{fwd.1} parent=1 // pred_check_branch
      %24 = sbr.rel (0) target = $region13
    $region12: #{fwd.1} parent=1 // pred_region
      _
    $region13: #{fwd.1} parent=1 // pred_fallthru
      _
    // Predicated region
    $region14: #{fwd.1} parent=1 // pred_check
      _
    $region15: #{fwd.1} parent=1 // pred_check_branch
      %26 = sbr.rel (0) target = $region17
    $region16: #{fwd.1} parent=1 // pred_region
      %27 = dma.done [#allocation3], 4096
    $region17: #{fwd.1} parent=1 // pred_fallthru
      _
    %v29 = vld [vmem:[%s0] sm:$0xff]
    %v30 = vlaneseq
    %v31 = vand.u32 %v30, 127
    %v32 = vld [vmem:[%s2] sm:$0xf]
    %v33 = vld [vmem:[#allocation2] sm:$0xf]
    %v34 = vld [vmem:[#allocation2 + $0x4] sm:$0xf]
    %v35 = vld [vmem:[#allocation2 + $0x8] sm:$0xf]
    %v36 = vld [vmem:[#allocation2 + $0xc] sm:$0xf]
    %v37 = vld [vmem:[#allocation2 + $0x10] sm:$0xf]
    %v38 = vld [vmem:[#allocation2 + $0x14] sm:$0xf]
    %v39 = vld [vmem:[#allocation2 + $0x18] sm:$0xf]
    %v40 = vld [vmem:[#allocation2 + $0x1c] sm:$0xf]
    %v41 = vld [vmem:[#allocation2 + $0x20] sm:$0xf]
    %v42 = vld [vmem:[#allocation2 + $0x24] sm:$0xf]
    %v43 = vld [vmem:[#allocation2 + $0x28] sm:$0xf]
    %v44 = vld [vmem:[#allocation2 + $0x2c] sm:$0xf]
    %v45 = vld [vmem:[#allocation2 + $0x30] sm:$0xf]
    %v46 = vld [vmem:[#allocation2 + $0x34] sm:$0xf]
    %v47 = vld [vmem:[#allocation2 + $0x38] sm:$0xf]
    %v48 = vld [vmem:[#allocation2 + $0x3c] sm:$0xf]
    %v49 = vpack.c.bf16 %v29, %v29
    %v50 = vlaneseq
    %v51 = vshrl.u32 %v50, 7
    %v52 = vsub.s32 0, %v51
    %v53 = vrot.slane %v32, %v52
    %v70 = vunpack.c.l.b16 %v33
    %v71 = vunpack.c.l.b16 %v34
    %v72 = vunpack.c.l.b16 %v35
    %v73 = vunpack.c.l.b16 %v36
    %v74 = vunpack.c.l.b16 %v37
    %v75 = vunpack.c.l.b16 %v38
    %v76 = vunpack.c.l.b16 %v39
    %v77 = vunpack.c.l.b16 %v40
    %v78 = vunpack.c.l.b16 %v41
    %v79 = vunpack.c.l.b16 %v42
    %v80 = vunpack.c.l.b16 %v43
    %v81 = vunpack.c.l.b16 %v44
    %v82 = vunpack.c.l.b16 %v45
    %v83 = vunpack.c.l.b16 %v46
    %v84 = vunpack.c.l.b16 %v47
    %v85 = vunpack.c.l.b16 %v48
    %v86 = vpack.c.b16 %v71, %v70
    %v87 = vpack.c.b16 %v73, %v72
    %v88 = vpack.c.b16 %v75, %v74
    %v89 = vpack.c.b16 %v77, %v76
    %v90 = vpack.c.b16 %v79, %v78
    %v91 = vpack.c.b16 %v81, %v80
    %v92 = vpack.c.b16 %v83, %v82
    %v93 = vpack.c.b16 %v85, %v84
    %102 = vmatprep.subr.bf16.mxu0 0
    %103 = vmatpush1.bf16.msra.mxu0 %v93
    %104 = vmatprep.subr.bf16.mxu0 0
    %105 = vmatpush1.bf16.msra.mxu0 %v92
    %106 = vmatprep.subr.bf16.mxu0 0
    %107 = vmatpush1.bf16.msra.mxu0 %v91
    %108 = vmatprep.subr.bf16.mxu0 0
    %109 = vmatpush1.bf16.msra.mxu0 %v90
    %110 = vmatprep.subr.bf16.mxu0 0
    %111 = vmatpush1.bf16.msra.mxu0 %v89
    %112 = vmatprep.subr.bf16.mxu0 0
    %113 = vmatpush1.bf16.msra.mxu0 %v88
    %114 = vmatprep.subr.bf16.mxu0 0
    %115 = vmatpush1.bf16.msra.mxu0 %v87
    %116 = vmatprep.subr.bf16.mxu0 0
    %117 = vmatpush1.bf16.msra.mxu0 %v86
    %118 = vmatprep.subr.bf16.mxu0 0
    %119 = vmatpush2.bf16.msra.mxu0 0
    %120 = vmatprep.subr.bf16.mxu0 0
    %121 = vmatpush2.bf16.msra.mxu0 0
    %122 = vmatprep.subr.bf16.mxu0 0
    %123 = vmatpush2.bf16.msra.mxu0 0
    %124 = vmatprep.subr.bf16.mxu0 0
    %125 = vmatpush2.bf16.msra.mxu0 0
    %126 = vmatprep.subr.bf16.mxu0 0
    %127 = vmatpush2.bf16.msra.mxu0 0
    %128 = vmatprep.subr.bf16.mxu0 0
    %129 = vmatpush2.bf16.msra.mxu0 0
    %130 = vmatprep.subr.bf16.mxu0 0
    %131 = vmatpush2.bf16.msra.mxu0 0
    %132 = vmatprep.subr.bf16.mxu0 0
    %133 = vmatpush2.bf16.msra.mxu0 0
    %134 = vmatprep.mubr.bf16.mxu0 0
    %135 = vmatmul.mubr.bf16.gmra.mxu0 %v49
    %v136 = vpop.f32.mrf.mxu0
    %v137 = vadd.f32 %v53, %v136
    %v138 = vpop.f32.mrf.mxu0
    %v139 = vpop.f32.mrf.mxu0
    %v140 = vpop.f32.mrf.mxu0
    %141 = vdwg.mxu0
    %vm142 = vcmp.gt.f32.partialorder %v137, 0.0
    %v143 = vmul.f32 %v137, 0.2
    %v144 = vsel %vm142, %v137, %v143
    %s145 = scalar_lea.vmem [#allocation2], 64
    %v146 = vld [vmem:[%s145] sm:$0xf]
    %v147 = vld [vmem:[%s145 + $0x4] sm:$0xf]
    %v148 = vld [vmem:[%s145 + $0x8] sm:$0xf]
    %v149 = vld [vmem:[%s145 + $0xc] sm:$0xf]
    %v150 = vld [vmem:[%s145 + $0x10] sm:$0xf]
    %v151 = vld [vmem:[%s145 + $0x14] sm:$0xf]
    %v152 = vld [vmem:[%s145 + $0x18] sm:$0xf]
    %v153 = vld [vmem:[%s145 + $0x1c] sm:$0xf]
    %v154 = vld [vmem:[%s145 + $0x20] sm:$0xf]
    %v155 = vld [vmem:[%s145 + $0x24] sm:$0xf]
    %v156 = vld [vmem:[%s145 + $0x28] sm:$0xf]
    %v157 = vld [vmem:[%s145 + $0x2c] sm:$0xf]
    %v158 = vld [vmem:[%s145 + $0x30] sm:$0xf]
    %v159 = vld [vmem:[%s145 + $0x34] sm:$0xf]
    %v160 = vld [vmem:[%s145 + $0x38] sm:$0xf]
    %v161 = vld [vmem:[%s145 + $0x3c] sm:$0xf]
    %v162 = vpack.c.bf16 %v144, %v144
    %v163 = vlaneseq
    %v164 = vshrl.u32 %v163, 7
    %v165 = vsub.s32 1, %v164
    %v166 = vrot.slane %v32, %v165
    %v183 = vunpack.c.l.b16 %v146
    %v184 = vunpack.c.l.b16 %v147
    %v185 = vunpack.c.l.b16 %v148
    %v186 = vunpack.c.l.b16 %v149
    %v187 = vunpack.c.l.b16 %v150
    %v188 = vunpack.c.l.b16 %v151
    %v189 = vunpack.c.l.b16 %v152
    %v190 = vunpack.c.l.b16 %v153
    %v191 = vunpack.c.l.b16 %v154
    %v192 = vunpack.c.l.b16 %v155
    %v193 = vunpack.c.l.b16 %v156
    %v194 = vunpack.c.l.b16 %v157
    %v195 = vunpack.c.l.b16 %v158
    %v196 = vunpack.c.l.b16 %v159
    %v197 = vunpack.c.l.b16 %v160
    %v198 = vunpack.c.l.b16 %v161
    %v199 = vpack.c.b16 %v184, %v183
    %v200 = vpack.c.b16 %v186, %v185
    %v201 = vpack.c.b16 %v188, %v187
    %v202 = vpack.c.b16 %v190, %v189
    %v203 = vpack.c.b16 %v192, %v191
    %v204 = vpack.c.b16 %v194, %v193
    %v205 = vpack.c.b16 %v196, %v195
    %v206 = vpack.c.b16 %v198, %v197
    %215 = vmatprep.subr.bf16.mxu0 0
    %216 = vmatpush1.bf16.msra.mxu0 %v206
    %217 = vmatprep.subr.bf16.mxu0 0
    %218 = vmatpush1.bf16.msra.mxu0 %v205
    %219 = vmatprep.subr.bf16.mxu0 0
    %220 = vmatpush1.bf16.msra.mxu0 %v204
    %221 = vmatprep.subr.bf16.mxu0 0
    %222 = vmatpush1.bf16.msra.mxu0 %v203
    %223 = vmatprep.subr.bf16.mxu0 0
    %224 = vmatpush1.bf16.msra.mxu0 %v202
    %225 = vmatprep.subr.bf16.mxu0 0
    %226 = vmatpush1.bf16.msra.mxu0 %v201
    %227 = vmatprep.subr.bf16.mxu0 0
    %228 = vmatpush1.bf16.msra.mxu0 %v200
    %229 = vmatprep.subr.bf16.mxu0 0
    %230 = vmatpush1.bf16.msra.mxu0 %v199
    %231 = vmatprep.subr.bf16.mxu0 0
    %232 = vmatpush2.bf16.msra.mxu0 0
    %233 = vmatprep.subr.bf16.mxu0 0
    %234 = vmatpush2.bf16.msra.mxu0 0
    %235 = vmatprep.subr.bf16.mxu0 0
    %236 = vmatpush2.bf16.msra.mxu0 0
    %237 = vmatprep.subr.bf16.mxu0 0
    %238 = vmatpush2.bf16.msra.mxu0 0
    %239 = vmatprep.subr.bf16.mxu0 0
    %240 = vmatpush2.bf16.msra.mxu0 0
    %241 = vmatprep.subr.bf16.mxu0 0
    %242 = vmatpush2.bf16.msra.mxu0 0
    %243 = vmatprep.subr.bf16.mxu0 0
    %244 = vmatpush2.bf16.msra.mxu0 0
    %245 = vmatprep.subr.bf16.mxu0 0
    %246 = vmatpush2.bf16.msra.mxu0 0
    %247 = vmatprep.mubr.bf16.mxu0 0
    %248 = vmatmul.mubr.bf16.gmra.mxu0 %v162
    %v249 = vpop.f32.mrf.mxu0
    %v250 = vadd.f32 %v166, %v249
    %v251 = vpop.f32.mrf.mxu0
    %v252 = vpop.f32.mrf.mxu0
    %v253 = vpop.f32.mrf.mxu0
    %254 = vdwg.mxu0
    %vm255 = vcmp.gt.f32.partialorder %v250, 0.0
    %v256 = vmul.f32 %v250, 0.2
    %v257 = vsel %vm255, %v250, %v256
    %s258 = scalar_lea.vmem [#allocation2], 128
    %v259 = vld [vmem:[%s258] sm:$0xf]
    %v260 = vld [vmem:[%s258 + $0x4] sm:$0xf]
    %v261 = vld [vmem:[%s258 + $0x8] sm:$0xf]
    %v262 = vld [vmem:[%s258 + $0xc] sm:$0xf]
    %v263 = vld [vmem:[%s258 + $0x10] sm:$0xf]
    %v264 = vld [vmem:[%s258 + $0x14] sm:$0xf]
    %v265 = vld [vmem:[%s258 + $0x18] sm:$0xf]
    %v266 = vld [vmem:[%s258 + $0x1c] sm:$0xf]
    %v267 = vld [vmem:[%s258 + $0x20] sm:$0xf]
    %v268 = vld [vmem:[%s258 + $0x24] sm:$0xf]
    %v269 = vld [vmem:[%s258 + $0x28] sm:$0xf]
    %v270 = vld [vmem:[%s258 + $0x2c] sm:$0xf]
    %v271 = vld [vmem:[%s258 + $0x30] sm:$0xf]
    %v272 = vld [vmem:[%s258 + $0x34] sm:$0xf]
    %v273 = vld [vmem:[%s258 + $0x38] sm:$0xf]
    %v274 = vld [vmem:[%s258 + $0x3c] sm:$0xf]
    %v275 = vpack.c.bf16 %v257, %v257
    %v276 = vlaneseq
    %v277 = vshrl.u32 %v276, 7
    %v278 = vsub.s32 2, %v277
    %v279 = vrot.slane %v32, %v278
    %v296 = vunpack.c.l.b16 %v259
    %v297 = vunpack.c.l.b16 %v260
    %v298 = vunpack.c.l.b16 %v261
    %v299 = vunpack.c.l.b16 %v262
    %v300 = vunpack.c.l.b16 %v263
    %v301 = vunpack.c.l.b16 %v264
    %v302 = vunpack.c.l.b16 %v265
    %v303 = vunpack.c.l.b16 %v266
    %v304 = vunpack.c.l.b16 %v267
    %v305 = vunpack.c.l.b16 %v268
    %v306 = vunpack.c.l.b16 %v269
    %v307 = vunpack.c.l.b16 %v270
    %v308 = vunpack.c.l.b16 %v271
    %v309 = vunpack.c.l.b16 %v272
    %v310 = vunpack.c.l.b16 %v273
    %v311 = vunpack.c.l.b16 %v274
    %v312 = vpack.c.b16 %v297, %v296
    %v313 = vpack.c.b16 %v299, %v298
    %v314 = vpack.c.b16 %v301, %v300
    %v315 = vpack.c.b16 %v303, %v302
    %v316 = vpack.c.b16 %v305, %v304
    %v317 = vpack.c.b16 %v307, %v306
    %v318 = vpack.c.b16 %v309, %v308
    %v319 = vpack.c.b16 %v311, %v310
    %328 = vmatprep.subr.bf16.mxu0 0
    %329 = vmatpush1.bf16.msra.mxu0 %v319
    %330 = vmatprep.subr.bf16.mxu0 0
    %331 = vmatpush1.bf16.msra.mxu0 %v318
    %332 = vmatprep.subr.bf16.mxu0 0
    %333 = vmatpush1.bf16.msra.mxu0 %v317
    %334 = vmatprep.subr.bf16.mxu0 0
    %335 = vmatpush1.bf16.msra.mxu0 %v316
    %336 = vmatprep.subr.bf16.mxu0 0
    %337 = vmatpush1.bf16.msra.mxu0 %v315
    %338 = vmatprep.subr.bf16.mxu0 0
    %339 = vmatpush1.bf16.msra.mxu0 %v314
    %340 = vmatprep.subr.bf16.mxu0 0
    %341 = vmatpush1.bf16.msra.mxu0 %v313
    %342 = vmatprep.subr.bf16.mxu0 0
    %343 = vmatpush1.bf16.msra.mxu0 %v312
    %344 = vmatprep.subr.bf16.mxu0 0
    %345 = vmatpush2.bf16.msra.mxu0 0
    %346 = vmatprep.subr.bf16.mxu0 0
    %347 = vmatpush2.bf16.msra.mxu0 0
    %348 = vmatprep.subr.bf16.mxu0 0
    %349 = vmatpush2.bf16.msra.mxu0 0
    %350 = vmatprep.subr.bf16.mxu0 0
    %351 = vmatpush2.bf16.msra.mxu0 0
    %352 = vmatprep.subr.bf16.mxu0 0
    %353 = vmatpush2.bf16.msra.mxu0 0
    %354 = vmatprep.subr.bf16.mxu0 0
    %355 = vmatpush2.bf16.msra.mxu0 0
    %356 = vmatprep.subr.bf16.mxu0 0
    %357 = vmatpush2.bf16.msra.mxu0 0
    %358 = vmatprep.subr.bf16.mxu0 0
    %359 = vmatpush2.bf16.msra.mxu0 0
    %360 = vmatprep.mubr.bf16.mxu0 0
    %361 = vmatmul.mubr.bf16.gmra.mxu0 %v275
    %v362 = vpop.f32.mrf.mxu0
    %v363 = vadd.f32 %v279, %v362
    %v364 = vpop.f32.mrf.mxu0
    %v365 = vpop.f32.mrf.mxu0
    %v366 = vpop.f32.mrf.mxu0
    %367 = vdwg.mxu0
    %vm368 = vcmp.eq.s32.totalorder %v31, 64
    %v369 = vxor.u32 %v363, 2147483648
    %v370 = vmul.f32 %v369, 1.442695
    %v371 = vpow.pop %v370
    %v372 = vadd.f32 %v371, 1.0
    %v373 = vrcp.pop %v372
    %v374 = vmul.f32 1.0, %v373
    %vm375 = vcmp.gt.f32.partialorder %v363, 0.0
    %v376 = vmul.f32 %v363, 0.2
    %v377 = vsel %vm375, %v363, %v376
    %v378 = vsel %vm368, %v374, %v377
    %s379 = scalar_lea.vmem [#allocation2], 192
    %v380 = vld [vmem:[%s379] sm:$0xf]
    %v381 = vld [vmem:[%s379 + $0x4] sm:$0xf]
    %v382 = vld [vmem:[%s379 + $0x8] sm:$0xf]
    %v383 = vld [vmem:[%s379 + $0xc] sm:$0xf]
    %v384 = vld [vmem:[%s379 + $0x10] sm:$0xf]
    %v385 = vld [vmem:[%s379 + $0x14] sm:$0xf]
    %v386 = vld [vmem:[%s379 + $0x18] sm:$0xf]
    %v387 = vld [vmem:[%s379 + $0x1c] sm:$0xf]
    %v388 = vld [vmem:[%s379 + $0x20] sm:$0xf]
    %v389 = vld [vmem:[%s379 + $0x24] sm:$0xf]
    %v390 = vld [vmem:[%s379 + $0x28] sm:$0xf]
    %v391 = vld [vmem:[%s379 + $0x2c] sm:$0xf]
    %v392 = vld [vmem:[%s379 + $0x30] sm:$0xf]
    %v393 = vld [vmem:[%s379 + $0x34] sm:$0xf]
    %v394 = vld [vmem:[%s379 + $0x38] sm:$0xf]
    %v395 = vld [vmem:[%s379 + $0x3c] sm:$0xf]
    %v396 = vpack.c.bf16 %v378, %v378
    %v397 = vlaneseq
    %v398 = vshrl.u32 %v397, 7
    %v399 = vsub.s32 3, %v398
    %v400 = vrot.slane %v32, %v399
    %v417 = vunpack.c.l.b16 %v380
    %v418 = vunpack.c.l.b16 %v381
    %v419 = vunpack.c.l.b16 %v382
    %v420 = vunpack.c.l.b16 %v383
    %v421 = vunpack.c.l.b16 %v384
    %v422 = vunpack.c.l.b16 %v385
    %v423 = vunpack.c.l.b16 %v386
    %v424 = vunpack.c.l.b16 %v387
    %v425 = vunpack.c.l.b16 %v388
    %v426 = vunpack.c.l.b16 %v389
    %v427 = vunpack.c.l.b16 %v390
    %v428 = vunpack.c.l.b16 %v391
    %v429 = vunpack.c.l.b16 %v392
    %v430 = vunpack.c.l.b16 %v393
    %v431 = vunpack.c.l.b16 %v394
    %v432 = vunpack.c.l.b16 %v395
    %v433 = vpack.c.b16 %v418, %v417
    %v434 = vpack.c.b16 %v420, %v419
    %v435 = vpack.c.b16 %v422, %v421
    %v436 = vpack.c.b16 %v424, %v423
    %v437 = vpack.c.b16 %v426, %v425
    %v438 = vpack.c.b16 %v428, %v427
    %v439 = vpack.c.b16 %v430, %v429
    %v440 = vpack.c.b16 %v432, %v431
    %449 = vmatprep.subr.bf16.mxu0 0
    %450 = vmatpush1.bf16.msra.mxu0 %v440
    %451 = vmatprep.subr.bf16.mxu0 0
    %452 = vmatpush1.bf16.msra.mxu0 %v439
    %453 = vmatprep.subr.bf16.mxu0 0
    %454 = vmatpush1.bf16.msra.mxu0 %v438
    %455 = vmatprep.subr.bf16.mxu0 0
    %456 = vmatpush1.bf16.msra.mxu0 %v437
    %457 = vmatprep.subr.bf16.mxu0 0
    %458 = vmatpush1.bf16.msra.mxu0 %v436
    %459 = vmatprep.subr.bf16.mxu0 0
    %460 = vmatpush1.bf16.msra.mxu0 %v435
    %461 = vmatprep.subr.bf16.mxu0 0
    %462 = vmatpush1.bf16.msra.mxu0 %v434
    %463 = vmatprep.subr.bf16.mxu0 0
    %464 = vmatpush1.bf16.msra.mxu0 %v433
    %465 = vmatprep.subr.bf16.mxu0 0
    %466 = vmatpush2.bf16.msra.mxu0 0
    %467 = vmatprep.subr.bf16.mxu0 0
    %468 = vmatpush2.bf16.msra.mxu0 0
    %469 = vmatprep.subr.bf16.mxu0 0
    %470 = vmatpush2.bf16.msra.mxu0 0
    %471 = vmatprep.subr.bf16.mxu0 0
    %472 = vmatpush2.bf16.msra.mxu0 0
    %473 = vmatprep.subr.bf16.mxu0 0
    %474 = vmatpush2.bf16.msra.mxu0 0
    %475 = vmatprep.subr.bf16.mxu0 0
    %476 = vmatpush2.bf16.msra.mxu0 0
    %477 = vmatprep.subr.bf16.mxu0 0
    %478 = vmatpush2.bf16.msra.mxu0 0
    %479 = vmatprep.subr.bf16.mxu0 0
    %480 = vmatpush2.bf16.msra.mxu0 0
    %481 = vmatprep.mubr.bf16.mxu0 0
    %482 = vmatmul.mubr.bf16.gmra.mxu0 %v396
    %v483 = vpop.f32.mrf.mxu0
    %v484 = vadd.f32 %v400, %v483
    %v485 = vpop.f32.mrf.mxu0
    %v486 = vpop.f32.mrf.mxu0
    %v487 = vpop.f32.mrf.mxu0
    %488 = vdwg.mxu0
    %vm489 = vcmp.lt.s32.totalorder %v31, 32
    %v490 = vsel %vm489, %v29, 0.0
    %v491 = vadd.f32 %v484, %v490
    %v492 = vsel %vm368, %v374, 0.0
    %v493 = vadd.f32 %v491, %v492
    %494 = vst [vmem:[%s3] sm:$0xff] %v493
    // Predicated region
    $region18: #{fwd.1} parent=1 // pred_check
      _
    $region19: #{fwd.1} parent=1 // pred_check_branch
      %496 = sbr.rel (0) target = $region21
    $region20: #{fwd.1} parent=1 // pred_region
      _
    $region21: #{fwd.1} parent=1 // pred_fallthru
      _
    // Predicated region
    $region22: #{fwd.1} parent=1 // pred_check
      _
    $region23: #{fwd.1} parent=1 // pred_check_branch
      %498 = sbr.rel (0) target = $region25
    $region24: #{fwd.1} parent=1 // pred_region
      _
    $region25: #{fwd.1} parent=1 // pred_fallthru
      _
    %499 = vsyncpa [#allocation3], 1

</llo_original>
